<compile_context>
chip_gen: v7x
topology: tpu7x:2x2x1
jax: 0.10.0
libtpu: 0.0.40
codegen_flags: <defaults>
</compile_context>

<pallas_src>
import functools

import jax
import jax.numpy as jnp
from jax.experimental import pallas as pl
from jax.experimental.pallas import tpu as pltpu

EPS = 1e-5
LANE = 128
TM = 256  # rows (M) per grid step; multiple of 8 (f32) / 16 (bf16), MXU-friendly


def _round_up(x, m):
    return (x + m - 1) // m * m


# ----------------------------- Pass 1 -----------------------------
def conv_stats_kernel(x_ref, w_ref, y_ref, sum_ref, sq_ref):
    """Conv-as-matmul tile + per-channel batch-stat accumulation.

    x_ref:   (TM, Kp)  bf16 im2col tile
    w_ref:   (Kp, Cp)  bf16 reshaped/padded conv weight (resident)
    y_ref:   (TM, Cp)  f32 conv output tile (pre-BN)
    sum_ref: (1,  Cp)  f32 running per-channel sum      (accumulator)
    sq_ref:  (1,  Cp)  f32 running per-channel sum(y^2) (accumulator)
    """
    @pl.when(pl.program_id(0) == 0)
    def _():
        sum_ref[...] = jnp.zeros_like(sum_ref)
        sq_ref[...] = jnp.zeros_like(sq_ref)

    # bf16 x bf16 -> f32 on the MXU.  No conv bias: a per-channel constant is
    # exactly cancelled by the training-mode BN mean subtraction.
    y = jnp.dot(x_ref[...], w_ref[...], preferred_element_type=jnp.float32)
    y_ref[...] = y

    # Zero-padded M rows contribute exactly 0 to both sums (no bias), and the
    # finalization divides by the true M, so stats are exact without masking.
    sum_ref[...] += jnp.sum(y, axis=0, keepdims=True)
    sq_ref[...] += jnp.sum(y * y, axis=0, keepdims=True)


# ----------------------------- Pass 2 -----------------------------
def bn_relu_kernel(y_ref, sum_ref, sq_ref, gamma_ref, beta_ref, o_ref, *, m_total):
    """Finalize batch stats, apply folded affine + ReLU (one FMA + max per elem)."""
    inv_m = 1.0 / m_total
    mean = sum_ref[...] * inv_m                       # (1, Cp)
    var = sq_ref[...] * inv_m - mean * mean           # biased variance
    inv_std = jax.lax.rsqrt(var + EPS)                # EUP slot
    scale = gamma_ref[...] * inv_std
    shift = beta_ref[...] - mean * scale
    o_ref[...] = jnp.maximum(y_ref[...] * scale + shift, 0.0).astype(o_ref.dtype)


# ----------------------------- Wrapper -----------------------------
@jax.jit
def cnn_block_forward(x, weight, bias, gamma, beta):
    """x: (N, Cin, H, W) NCHW; weight: (Cout, Cin, kh, kw). `bias` is accepted for
    interface fidelity but intentionally unused (cancelled by BatchNorm)."""
    del bias
    N, Cin, H, W = x.shape
    Cout, _, kh, kw = weight.shape
    OH, OW = H - kh + 1, W - kw + 1          # Conv2d defaults: stride=1, padding=0
    M = N * OH * OW
    K = Cin * kh * kw
    Kp = _round_up(K, LANE)
    Cp = _round_up(Cout, LANE)
    Mp = _round_up(M, TM)
    GM = Mp // TM

    # --- boundary + im2col glue (plain JAX): NCHW -> NHWC once, one fused
    # slice/stack/reshape (contiguous in (p, ci) order), then pad + bf16 cast.
    x_nhwc = jnp.transpose(x, (0, 2, 3, 1)).astype(jnp.float32)    # (N, H, W, Cin)
    patches = jnp.stack(
        [x_nhwc[:, i:i + OH, j:j + OW, :] for i in range(kh) for j in range(kw)],
        axis=3,
    )                                                              # (N, OH, OW, kh*kw, Cin)
    xm = patches.reshape(M, K)                                     # col = (ki*kw+kj)*Cin + ci
    xm = jnp.pad(xm, ((0, Mp - M), (0, Kp - K))).astype(jnp.bfloat16)

    # weight (Cout,Cin,kh,kw) -> (kh,kw,Cin,Cout) -> (K,Cout), matching xm's K order.
    wm = jnp.transpose(weight, (2, 3, 1, 0)).reshape(K, Cout).astype(jnp.float32)
    wm = jnp.pad(wm, ((0, Kp - K), (0, Cp - Cout))).astype(jnp.bfloat16)

    gamma_p = jnp.pad(gamma.astype(jnp.float32), (0, Cp - Cout)).reshape(1, Cp)
    beta_p = jnp.pad(beta.astype(jnp.float32), (0, Cp - Cout)).reshape(1, Cp)

    # --- Pass 1: pipelined matmul over M tiles + stats accumulator ---
    y_pad, ch_sum, ch_sq = pl.pallas_call(
        conv_stats_kernel,
        out_shape=(
            jax.ShapeDtypeStruct((Mp, Cp), jnp.float32),
            jax.ShapeDtypeStruct((1, Cp), jnp.float32),
            jax.ShapeDtypeStruct((1, Cp), jnp.float32),
        ),
        grid=(GM,),
        in_specs=[
            pl.BlockSpec((TM, Kp), lambda i: (i, 0)),
            pl.BlockSpec((Kp, Cp), lambda i: (0, 0)),
        ],
        out_specs=(
            pl.BlockSpec((TM, Cp), lambda i: (i, 0)),
            pl.BlockSpec((1, Cp), lambda i: (0, 0)),
            pl.BlockSpec((1, Cp), lambda i: (0, 0)),
        ),
        compiler_params=pltpu.CompilerParams(
            dimension_semantics=("arbitrary",),   # stats block revisited every step
            vmem_limit_bytes=32 * 1024 * 1024,
        ),
    )(xm, wm)

    # --- Pass 2: finalize BN + ReLU, written in place over the y buffer ---
    out_pad = pl.pallas_call(
        functools.partial(bn_relu_kernel, m_total=M),
        out_shape=jax.ShapeDtypeStruct((Mp, Cp), jnp.float32),
        grid=(GM,),
        in_specs=[
            pl.BlockSpec((TM, Cp), lambda i: (i, 0)),
            pl.BlockSpec((1, Cp), lambda i: (0, 0)),
            pl.BlockSpec((1, Cp), lambda i: (0, 0)),
            pl.BlockSpec((1, Cp), lambda i: (0, 0)),
            pl.BlockSpec((1, Cp), lambda i: (0, 0)),
        ],
        out_specs=pl.BlockSpec((TM, Cp), lambda i: (i, 0)),
        input_output_aliases={0: 0},
        compiler_params=pltpu.CompilerParams(
            dimension_semantics=("parallel",),    # fully independent tiles (megacore)
            vmem_limit_bytes=32 * 1024 * 1024,
        ),
    )(y_pad, ch_sum, ch_sq, gamma_p, beta_p)

    # Drop padded rows/channels, back to NCHW at the module boundary only.
    out = out_pad[:M, :Cout].reshape(N, OH, OW, Cout)
    return jnp.transpose(out, (0, 3, 1, 2))


# ----------------------------- Reference -----------------------------
def _reference_forward(x, weight, bias, gamma, beta):
    """Pure-JAX reference (conv + training-mode BN + relu). Conv inputs are
    bf16-rounded to mirror the kernel's bf16 MXU path (f32 accumulation)."""
    xq = x.astype(jnp.bfloat16).astype(jnp.float32)
    wq = weight.astype(jnp.bfloat16).astype(jnp.float32)
    y = jax.lax.conv_general_dilated(
        xq, wq, window_strides=(1, 1), padding="VALID",
        dimension_numbers=("NCHW", "OIHW", "NCHW"),
    ) + bias.reshape(1, -1, 1, 1)
    mean = jnp.mean(y, axis=(0, 2, 3), keepdims=True)
    var = jnp.mean((y - mean) ** 2, axis=(0, 2, 3), keepdims=True)
    yhat = (y - mean) * jax.lax.rsqrt(var + EPS)
    out = yhat * gamma.reshape(1, -1, 1, 1) + beta.reshape(1, -1, 1, 1)
    return jnp.maximum(out, 0.0)


if __name__ == "__main__":
    # cnn_block(input_size=4, output_size=8, kernel=3)
    N, Cin, H, W = 2, 4, 16, 16
    Cout, k = 8, 3

    key = jax.random.PRNGKey(0)
    kx, kw_, kb = jax.random.split(key, 3)

    x = jax.random.normal(kx, (N, Cin, H, W), dtype=jnp.float32)
    fan_in = Cin * k * k
    bound = 1.0 / (fan_in ** 0.5)
    conv_w = jax.random.uniform(kw_, (Cout, Cin, k, k), jnp.float32, -bound, bound)
    conv_b = jax.random.uniform(kb, (Cout,), jnp.float32, -bound, bound)
    bn_gamma = jnp.ones((Cout,), jnp.float32)
    bn_beta = jnp.zeros((Cout,), jnp.float32)

    out = cnn_block_forward(x, conv_w, conv_b, bn_gamma, bn_beta)
    out = jax.block_until_ready(out)

    ref = _reference_forward(x, conv_w, conv_b, bn_gamma, bn_beta)
    assert out.shape == (N, Cout, H - k + 1, W - k + 1)
    assert jnp.allclose(out, ref, atol=1e-3, rtol=1e-3), float(jnp.max(jnp.abs(out - ref)))

    print("KERNEL_OK")
</pallas_src>

<mosaic_0001>
module attributes {stable_mosaic.version = 11 : i64} {
  func.func @conv_stats_kernel(%arg0: i32, %arg1: memref<256x128xbf16, #tpu.memory_space<vmem>>, %arg2: memref<128x128xbf16, #tpu.memory_space<vmem>>, %arg3: memref<256x128xf32, #tpu.memory_space<vmem>>, %arg4: memref<1x128xf32, #tpu.memory_space<vmem>>, %arg5: memref<1x128xf32, #tpu.memory_space<vmem>>) attributes {dimension_semantics = [#tpu.dimension_semantics<arbitrary>], iteration_bounds = array<i64: 2>, scalar_prefetch = 0 : i64, scratch_operands = 0 : i64, tpu.core_type = #tpu.core_type<tc>, window_params = [{transform_indices = @transform_0, window_bounds = array<i64: 256, 128>}, {pipeline_mode = #tpu.pipeline_mode<synchronous>, transform_indices = @transform_1, window_bounds = array<i64: 128, 128>}, {transform_indices = @transform_2, window_bounds = array<i64: 256, 128>}, {pipeline_mode = #tpu.pipeline_mode<synchronous>, transform_indices = @transform_3, window_bounds = array<i64: 1, 128>}, {pipeline_mode = #tpu.pipeline_mode<synchronous>, transform_indices = @transform_4, window_bounds = array<i64: 1, 128>}]} {
    %c0_i32 = arith.constant 0 : i32
    %0 = arith.cmpi eq, %arg0, %c0_i32 : i32
    %1 = arith.extui %0 : i1 to i32
    %c0_i32_0 = arith.constant 0 : i32
    %2 = arith.cmpi ne, %1, %c0_i32_0 : i32
    scf.if %2 {
      %cst_16 = arith.constant 0.000000e+00 : f32
      %18 = vector.broadcast %cst_16 : f32 to vector<1x128xf32>
      %c0_17 = arith.constant 0 : index
      %c0_18 = arith.constant 0 : index
      %19 = vector.load %arg4[%c0_17, %c0_18] : memref<1x128xf32, #tpu.memory_space<vmem>>, vector<1x128xf32>
      tpu.vector_store %arg4[%c0_17, %c0_18], %18 {strides = array<i32>} : memref<1x128xf32, #tpu.memory_space<vmem>>, vector<1x128xf32>,
      %cst_19 = arith.constant 0.000000e+00 : f32
      %20 = vector.broadcast %cst_19 : f32 to vector<1x128xf32>
      %c0_20 = arith.constant 0 : index
      %c0_21 = arith.constant 0 : index
      %21 = vector.load %arg5[%c0_20, %c0_21] : memref<1x128xf32, #tpu.memory_space<vmem>>, vector<1x128xf32>
      tpu.vector_store %arg5[%c0_20, %c0_21], %20 {strides = array<i32>} : memref<1x128xf32, #tpu.memory_space<vmem>>, vector<1x128xf32>,
    } else {
    }
    %c0 = arith.constant 0 : index
    %c0_1 = arith.constant 0 : index
    %3 = vector.load %arg1[%c0, %c0_1] : memref<256x128xbf16, #tpu.memory_space<vmem>>, vector<256x128xbf16>
    %c0_2 = arith.constant 0 : index
    %c0_3 = arith.constant 0 : index
    %4 = vector.load %arg2[%c0_2, %c0_3] : memref<128x128xbf16, #tpu.memory_space<vmem>>, vector<128x128xbf16>
    %cst = arith.constant dense<0.000000e+00> : vector<256x128xf32>
    %5 = tpu.matmul %3, %4, %cst {dimension_numbers = #tpu.dot_dimension_numbers<[1], [0], [0], [1], [0, 0, 1, 1], [], []>} : vector<256x128xbf16>, vector<128x128xbf16>, vector<256x128xf32> -> vector<256x128xf32>
    %c0_4 = arith.constant 0 : index
    %c0_5 = arith.constant 0 : index
    %6 = vector.load %arg3[%c0_4, %c0_5] : memref<256x128xf32, #tpu.memory_space<vmem>>, vector<256x128xf32>
    tpu.vector_store %arg3[%c0_4, %c0_5], %5 {strides = array<i32>} : memref<256x128xf32, #tpu.memory_space<vmem>>, vector<256x128xf32>,
    %c0_6 = arith.constant 0 : index
    %c0_7 = arith.constant 0 : index
    %7 = vector.load %arg4[%c0_6, %c0_7] : memref<1x128xf32, #tpu.memory_space<vmem>>, vector<1x128xf32>
    %cst_8 = arith.constant dense<0.000000e+00> : vector<128xf32>
    %8 = vector.multi_reduction <add>, %5, %cst_8 [0] : vector<256x128xf32> to vector<128xf32>
    %9 = vector.shape_cast %8 : vector<128xf32> to vector<1x128xf32>
    %10 = arith.addf %7, %9 : vector<1x128xf32>
    %c0_9 = arith.constant 0 : index
    %c0_10 = arith.constant 0 : index
    %11 = vector.load %arg4[%c0_9, %c0_10] : memref<1x128xf32, #tpu.memory_space<vmem>>, vector<1x128xf32>
    tpu.vector_store %arg4[%c0_9, %c0_10], %10 {strides = array<i32>} : memref<1x128xf32, #tpu.memory_space<vmem>>, vector<1x128xf32>,
    %c0_11 = arith.constant 0 : index
    %c0_12 = arith.constant 0 : index
    %12 = vector.load %arg5[%c0_11, %c0_12] : memref<1x128xf32, #tpu.memory_space<vmem>>, vector<1x128xf32>
    %13 = arith.mulf %5, %5 : vector<256x128xf32>
    %cst_13 = arith.constant dense<0.000000e+00> : vector<128xf32>
    %14 = vector.multi_reduction <add>, %13, %cst_13 [0] : vector<256x128xf32> to vector<128xf32>
    %15 = vector.shape_cast %14 : vector<128xf32> to vector<1x128xf32>
    %16 = arith.addf %12, %15 : vector<1x128xf32>
    %c0_14 = arith.constant 0 : index
    %c0_15 = arith.constant 0 : index
    %17 = vector.load %arg5[%c0_14, %c0_15] : memref<1x128xf32, #tpu.memory_space<vmem>>, vector<1x128xf32>
    tpu.vector_store %arg5[%c0_14, %c0_15], %16 {strides = array<i32>} : memref<1x128xf32, #tpu.memory_space<vmem>>, vector<1x128xf32>,
    return
  }
  func.func @transform_0(%arg0: i32) -> (i32, i32) {
    %c0_i32 = arith.constant 0 : i32
    %c0_i32_0 = arith.constant 0 : i32
    return %arg0, %c0_i32 : i32, i32
  }
  func.func @transform_1(%arg0: i32) -> (i32, i32) {
    %c0_i32 = arith.constant 0 : i32
    %c0_i32_0 = arith.constant 0 : i32
    %c0_i32_1 = arith.constant 0 : i32
    return %c0_i32, %c0_i32_0 : i32, i32
  }
  func.func @transform_2(%arg0: i32) -> (i32, i32) {
    %c0_i32 = arith.constant 0 : i32
    %c0_i32_0 = arith.constant 0 : i32
    return %arg0, %c0_i32 : i32, i32
  }
  func.func @transform_3(%arg0: i32) -> (i32, i32) {
    %c0_i32 = arith.constant 0 : i32
    %c0_i32_0 = arith.constant 0 : i32
    %c0_i32_1 = arith.constant 0 : i32
    return %c0_i32, %c0_i32_0 : i32, i32
  }
  func.func @transform_4(%arg0: i32) -> (i32, i32) {
    %c0_i32 = arith.constant 0 : i32
    %c0_i32_0 = arith.constant 0 : i32
    %c0_i32_1 = arith.constant 0 : i32
    return %c0_i32, %c0_i32_0 : i32, i32
  }
}

module attributes {stable_mosaic.version = 11 : i64} {
  func.func @bn_relu_kernel(%arg0: i32, %arg1: memref<256x128xf32, #tpu.memory_space<vmem>>, %arg2: memref<1x128xf32, #tpu.memory_space<vmem>>, %arg3: memref<1x128xf32, #tpu.memory_space<vmem>>, %arg4: memref<1x128xf32, #tpu.memory_space<vmem>>, %arg5: memref<1x128xf32, #tpu.memory_space<vmem>>, %arg6: memref<256x128xf32, #tpu.memory_space<vmem>>) attributes {dimension_semantics = [#tpu.dimension_semantics<parallel>], iteration_bounds = array<i64: 2>, scalar_prefetch = 0 : i64, scratch_operands = 0 : i64, tpu.core_type = #tpu.core_type<tc>, window_params = [{transform_indices = @transform_0, window_bounds = array<i64: 256, 128>}, {pipeline_mode = #tpu.pipeline_mode<synchronous>, transform_indices = @transform_1, window_bounds = array<i64: 1, 128>}, {pipeline_mode = #tpu.pipeline_mode<synchronous>, transform_indices = @transform_2, window_bounds = array<i64: 1, 128>}, {pipeline_mode = #tpu.pipeline_mode<synchronous>, transform_indices = @transform_3, window_bounds = array<i64: 1, 128>}, {pipeline_mode = #tpu.pipeline_mode<synchronous>, transform_indices = @transform_4, window_bounds = array<i64: 1, 128>}, {transform_indices = @transform_5, window_bounds = array<i64: 256, 128>}]} {
    %c0 = arith.constant 0 : index
    %c0_0 = arith.constant 0 : index
    %0 = vector.load %arg2[%c0, %c0_0] : memref<1x128xf32, #tpu.memory_space<vmem>>, vector<1x128xf32>
    %cst = arith.constant 0.00255102036 : f32
    %1 = vector.broadcast %cst : f32 to vector<1x128xf32>
    %2 = arith.mulf %0, %1 : vector<1x128xf32>
    %c0_1 = arith.constant 0 : index
    %c0_2 = arith.constant 0 : index
    %3 = vector.load %arg3[%c0_1, %c0_2] : memref<1x128xf32, #tpu.memory_space<vmem>>, vector<1x128xf32>
    %cst_3 = arith.constant 0.00255102036 : f32
    %4 = vector.broadcast %cst_3 : f32 to vector<1x128xf32>
    %5 = arith.mulf %3, %4 : vector<1x128xf32>
    %6 = arith.mulf %2, %2 : vector<1x128xf32>
    %7 = arith.subf %5, %6 : vector<1x128xf32>
    %cst_4 = arith.constant 9.99999974E-6 : f32
    %8 = vector.broadcast %cst_4 : f32 to vector<1x128xf32>
    %9 = arith.addf %7, %8 : vector<1x128xf32>
    %10 = math.rsqrt %9 : vector<1x128xf32>
    %c0_5 = arith.constant 0 : index
    %c0_6 = arith.constant 0 : index
    %11 = vector.load %arg4[%c0_5, %c0_6] : memref<1x128xf32, #tpu.memory_space<vmem>>, vector<1x128xf32>
    %12 = arith.mulf %11, %10 : vector<1x128xf32>
    %c0_7 = arith.constant 0 : index
    %c0_8 = arith.constant 0 : index
    %13 = vector.load %arg5[%c0_7, %c0_8] : memref<1x128xf32, #tpu.memory_space<vmem>>, vector<1x128xf32>
    %14 = arith.mulf %2, %12 : vector<1x128xf32>
    %15 = arith.subf %13, %14 : vector<1x128xf32>
    %c0_9 = arith.constant 0 : index
    %c0_10 = arith.constant 0 : index
    %16 = vector.load %arg1[%c0_9, %c0_10] : memref<256x128xf32, #tpu.memory_space<vmem>>, vector<256x128xf32>
    %17 = vector.broadcast %12 : vector<1x128xf32> to vector<256x128xf32>
    %18 = arith.mulf %16, %17 : vector<256x128xf32>
    %19 = vector.broadcast %15 : vector<1x128xf32> to vector<256x128xf32>
    %20 = arith.addf %18, %19 : vector<256x128xf32>
    %cst_11 = arith.constant 0.000000e+00 : f32
    %21 = vector.broadcast %cst_11 : f32 to vector<256x128xf32>
    %22 = arith.maximumf %20, %21 : vector<256x128xf32>
    %c0_12 = arith.constant 0 : index
    %c0_13 = arith.constant 0 : index
    %23 = vector.load %arg6[%c0_12, %c0_13] : memref<256x128xf32, #tpu.memory_space<vmem>>, vector<256x128xf32>
    tpu.vector_store %arg6[%c0_12, %c0_13], %22 {strides = array<i32>} : memref<256x128xf32, #tpu.memory_space<vmem>>, vector<256x128xf32>,
    return
  }
  func.func @transform_0(%arg0: i32) -> (i32, i32) {
    %c0_i32 = arith.constant 0 : i32
    %c0_i32_0 = arith.constant 0 : i32
    return %arg0, %c0_i32 : i32, i32
  }
  func.func @transform_1(%arg0: i32) -> (i32, i32) {
    %c0_i32 = arith.constant 0 : i32
    %c0_i32_0 = arith.constant 0 : i32
    %c0_i32_1 = arith.constant 0 : i32
    return %c0_i32, %c0_i32_0 : i32, i32
  }
  func.func @transform_2(%arg0: i32) -> (i32, i32) {
    %c0_i32 = arith.constant 0 : i32
    %c0_i32_0 = arith.constant 0 : i32
    %c0_i32_1 = arith.constant 0 : i32
    return %c0_i32, %c0_i32_0 : i32, i32
  }
  func.func @transform_3(%arg0: i32) -> (i32, i32) {
    %c0_i32 = arith.constant 0 : i32
    %c0_i32_0 = arith.constant 0 : i32
    %c0_i32_1 = arith.constant 0 : i32
    return %c0_i32, %c0_i32_0 : i32, i32
  }
  func.func @transform_4(%arg0: i32) -> (i32, i32) {
    %c0_i32 = arith.constant 0 : i32
    %c0_i32_0 = arith.constant 0 : i32
    %c0_i32_1 = arith.constant 0 : i32
    return %c0_i32, %c0_i32_0 : i32, i32
  }
  func.func @transform_5(%arg0: i32) -> (i32, i32) {
    %c0_i32 = arith.constant 0 : i32
    %c0_i32_0 = arith.constant 0 : i32
    return %arg0, %c0_i32 : i32, i32
  }
}

</mosaic_0001>

<llo_original>
// kernel: cnn_block_forward.3
$region0: #{cnn_block_forward.3}
  #allocation0 [shape = 'u32[]', space=smem, size = 0x4, offset = 0x4, fixed_abs, tag = 'smem constant byte address 0x4 - core index']
  #allocation1 [shape = 'u32[144,128]{1,0:T(1,128)}', space=vmem, size = 0x12000, scoped, tag = 'internal scratch']
  %s0 = inlined_call_operand.vmem [shape: f32[512,128], index: 0, kind: input, shape index: {}, may-alias: {0,5}]
  %s1 = inlined_call_operand.vmem [shape: f32[1,128], index: 1, kind: input, shape index: {}]
  %s2 = inlined_call_operand.vmem [shape: f32[1,128], index: 2, kind: input, shape index: {}]
  %s3 = inlined_call_operand.vmem [shape: f32[1,128], index: 3, kind: input, shape index: {}]
  %s4 = inlined_call_operand.vmem [shape: f32[1,128], index: 4, kind: input, shape index: {}]
  %s5 = inlined_call_operand.vmem [shape: f32[512,128], index: 5, kind: output, shape index: {}, may-alias: {0,5}]
  %s6 = sld [smem:[#allocation0]]
  $region53: #{cnn_block_forward.3} parent=0
    _
  %s8 = ssub.s32 1, %s6
  %s9 = scalar_select 0, %s8, %s6
  loop: start=0, step=1, limit=4
  $region2: #{cnn_block_forward.3} parent=0 // loop_pre_header
    _
  $region3: #{cnn_block_forward.3} parent=0 // loop_header
    %s11 = sphi 0, %s15
    %p12 = scmp.ge.s32.totalorder %s11, 4
    %s21 = sphi 0, %s23
    %s24 = sphi 0, %s21
    %s25 = sphi 0, %s24
    %s41 = sphi 0, %s25
    %s45 = sphi 0, %s45
    %s47 = sphi 0, %s45
    %s48 = sphi 0, %s47
    %s62 = sphi 0, %s48
    %s66 = sphi 0, %s66
    %s68 = sphi 0, %s66
    %s69 = sphi 0, %s68
    %s83 = sphi 0, %s69
    %s87 = sphi 0, %s87
    %s89 = sphi 0, %s87
    %s90 = sphi 0, %s89
    %s104 = sphi 0, %s90
    %s108 = sphi 0, %s108
    %s110 = sphi 0, %s108
    %s111 = sphi 0, %s110
    %s125 = sphi 0, %s111
    %s131 = sphi 0, %s133
    %s134 = sphi 0, %s131
    %s135 = sphi 0, %s134
    %s151 = sphi 0, %s135
  $region4: #{cnn_block_forward.3} parent=0 // loop_header_branch
    %14 = sbr.rel (%p12) target = $region8
  $region5: #{cnn_block_forward.3} parent=0 // loop_body
    %s16 = ssub.s32 %s11, 1
    %s17 = ssub.s32 %s11, 2
    %s18 = sadd.s32 %s11, 1
    %s19 = ssub.s32 %s11, %s18
    %p20 = scmp.eq.s32.totalorder %s19, 0
    %s22 = sadd.s32 %s21, 1
    %s23 = scalar_select %p20, %s21, %s22
    %p26 = pneg %p20
    %p27 = scmp.eq.s32.totalorder %s11, 1
    %p28 = por %p26, %p27
    %p29 = scmp.ne.s32.totalorder %s21, %s24
    %p30 = scmp.eq.s32.totalorder %s11, 0
    %p31 = por %p29, %p30
    %p32 = scmp.ne.s32.totalorder %s21, %s24
    %p33 = scmp.eq.s32.totalorder %s16, 1
    %p34 = por %p32, %p33
    %p35 = scmp.ne.s32.totalorder %s24, %s25
    %p36 = scmp.eq.s32.totalorder %s16, 0
    %p37 = por %p35, %p36
    %p38 = scmp.ne.s32.totalorder %s24, %s25
    %p39 = scmp.eq.s32.totalorder %s17, 1
    %p40 = por %p38, %p39
    %p42 = scmp.ne.s32.totalorder %s25, %s41
    %p43 = scmp.eq.s32.totalorder %s17, 0
    %p44 = por %p42, %p43
    %s46 = sadd.s32 %s45, 1
    %p49 = scmp.eq.s32.totalorder %s11, 1
    %p50 = scmp.ne.s32.totalorder %s45, %s47
    %p51 = scmp.eq.s32.totalorder %s11, 0
    %p52 = por %p50, %p51
    %p53 = scmp.ne.s32.totalorder %s45, %s47
    %p54 = scmp.eq.s32.totalorder %s16, 1
    %p55 = por %p53, %p54
    %p56 = scmp.ne.s32.totalorder %s47, %s48
    %p57 = scmp.eq.s32.totalorder %s16, 0
    %p58 = por %p56, %p57
    %p59 = scmp.ne.s32.totalorder %s47, %s48
    %p60 = scmp.eq.s32.totalorder %s17, 1
    %p61 = por %p59, %p60
    %p63 = scmp.ne.s32.totalorder %s48, %s62
    %p64 = scmp.eq.s32.totalorder %s17, 0
    %p65 = por %p63, %p64
    %s67 = sadd.s32 %s66, 1
    %p70 = scmp.eq.s32.totalorder %s11, 1
    %p71 = scmp.ne.s32.totalorder %s66, %s68
    %p72 = scmp.eq.s32.totalorder %s11, 0
    %p73 = por %p71, %p72
    %p74 = scmp.ne.s32.totalorder %s66, %s68
    %p75 = scmp.eq.s32.totalorder %s16, 1
    %p76 = por %p74, %p75
    %p77 = scmp.ne.s32.totalorder %s68, %s69
    %p78 = scmp.eq.s32.totalorder %s16, 0
    %p79 = por %p77, %p78
    %p80 = scmp.ne.s32.totalorder %s68, %s69
    %p81 = scmp.eq.s32.totalorder %s17, 1
    %p82 = por %p80, %p81
    %p84 = scmp.ne.s32.totalorder %s69, %s83
    %p85 = scmp.eq.s32.totalorder %s17, 0
    %p86 = por %p84, %p85
    %s88 = sadd.s32 %s87, 1
    %p91 = scmp.eq.s32.totalorder %s11, 1
    %p92 = scmp.ne.s32.totalorder %s87, %s89
    %p93 = scmp.eq.s32.totalorder %s11, 0
    %p94 = por %p92, %p93
    %p95 = scmp.ne.s32.totalorder %s87, %s89
    %p96 = scmp.eq.s32.totalorder %s16, 1
    %p97 = por %p95, %p96
    %p98 = scmp.ne.s32.totalorder %s89, %s90
    %p99 = scmp.eq.s32.totalorder %s16, 0
    %p100 = por %p98, %p99
    %p101 = scmp.ne.s32.totalorder %s89, %s90
    %p102 = scmp.eq.s32.totalorder %s17, 1
    %p103 = por %p101, %p102
    %p105 = scmp.ne.s32.totalorder %s90, %s104
    %p106 = scmp.eq.s32.totalorder %s17, 0
    %p107 = por %p105, %p106
    %s109 = sadd.s32 %s108, 1
    %p112 = scmp.eq.s32.totalorder %s11, 1
    %p113 = scmp.ne.s32.totalorder %s108, %s110
    %p114 = scmp.eq.s32.totalorder %s11, 0
    %p115 = por %p113, %p114
    %p116 = scmp.ne.s32.totalorder %s108, %s110
    %p117 = scmp.eq.s32.totalorder %s16, 1
    %p118 = por %p116, %p117
    %p119 = scmp.ne.s32.totalorder %s110, %s111
    %p120 = scmp.eq.s32.totalorder %s16, 0
    %p121 = por %p119, %p120
    %p122 = scmp.ne.s32.totalorder %s110, %s111
    %p123 = scmp.eq.s32.totalorder %s17, 1
    %p124 = por %p122, %p123
    %p126 = scmp.ne.s32.totalorder %s111, %s125
    %p127 = scmp.eq.s32.totalorder %s17, 0
    %p128 = por %p126, %p127
    %s129 = ssub.s32 %s11, %s18
    %p130 = scmp.eq.s32.totalorder %s129, 0
    %s132 = sadd.s32 %s131, 1
    %s133 = scalar_select %p130, %s131, %s132
    %p136 = pneg %p130
    %p137 = scmp.eq.s32.totalorder %s11, 1
    %p138 = por %p136, %p137
    %p139 = scmp.ne.s32.totalorder %s131, %s134
    %p140 = scmp.eq.s32.totalorder %s11, 0
    %p141 = por %p139, %p140
    %p142 = scmp.ne.s32.totalorder %s131, %s134
    %p143 = scmp.eq.s32.totalorder %s16, 1
    %p144 = por %p142, %p143
    %p145 = scmp.ne.s32.totalorder %s134, %s135
    %p146 = scmp.eq.s32.totalorder %s16, 0
    %p147 = por %p145, %p146
    %p148 = scmp.ne.s32.totalorder %s134, %s135
    %p149 = scmp.eq.s32.totalorder %s17, 1
    %p150 = por %p148, %p149
    %p152 = scmp.ne.s32.totalorder %s135, %s151
    %p153 = scmp.eq.s32.totalorder %s17, 0
    %p154 = por %p152, %p153
    %p155 = scmp.le.s32.totalorder 1, %s11
    %p156 = scmp.lt.s32.totalorder %s11, 3
    %p157 = pnand %p155, %p156
    %p158 = pneg %p157
    // Predicated region
    $region9: #{cnn_block_forward.3} parent=5 // pred_check
      _
    $region10: #{cnn_block_forward.3} parent=5 // pred_check_branch
      %160 = sbr.rel (%p157) target = $region12
    $region11: #{cnn_block_forward.3} parent=5 // pred_region
      %s161 = ssub.s32 %s11, 1
      // Predicated region
      $region13: #{cnn_block_forward.3} parent=11 // pred_check
        %p162 = pneg %p58
      $region14: #{cnn_block_forward.3} parent=11 // pred_check_branch
        %164 = sbr.rel (%p162) target = $region16
      $region15: #{cnn_block_forward.3} parent=11 // pred_region
        _
      $region16: #{cnn_block_forward.3} parent=11 // pred_fallthru
        _
      // Predicated region
      $region17: #{cnn_block_forward.3} parent=11 // pred_check
        %p165 = pneg %p79
      $region18: #{cnn_block_forward.3} parent=11 // pred_check_branch
        %167 = sbr.rel (%p165) target = $region20
      $region19: #{cnn_block_forward.3} parent=11 // pred_region
        _
      $region20: #{cnn_block_forward.3} parent=11 // pred_fallthru
        _
      // Predicated region
      $region21: #{cnn_block_forward.3} parent=11 // pred_check
        %p168 = pneg %p100
      $region22: #{cnn_block_forward.3} parent=11 // pred_check_branch
        %170 = sbr.rel (%p168) target = $region24
      $region23: #{cnn_block_forward.3} parent=11 // pred_region
        _
      $region24: #{cnn_block_forward.3} parent=11 // pred_fallthru
        _
      // Predicated region
      $region25: #{cnn_block_forward.3} parent=11 // pred_check
        %p171 = pneg %p121
      $region26: #{cnn_block_forward.3} parent=11 // pred_check_branch
        %173 = sbr.rel (%p171) target = $region28
      $region27: #{cnn_block_forward.3} parent=11 // pred_region
        _
      $region28: #{cnn_block_forward.3} parent=11 // pred_fallthru
        _
    $region12: #{cnn_block_forward.3} parent=5 // pred_fallthru
      _
    %p174 = scmp.lt.s32.totalorder %s11, 2
    // Predicated region
    $region29: #{cnn_block_forward.3} parent=5 // pred_check
      %p175 = pneg %p174
    $region30: #{cnn_block_forward.3} parent=5 // pred_check_branch
      %177 = sbr.rel (%p175) target = $region32
    $region31: #{cnn_block_forward.3} parent=5 // pred_region
      // Predicated region
      $region33: #{cnn_block_forward.3} parent=31 // pred_check
        %p178 = pneg %p31
      $region34: #{cnn_block_forward.3} parent=31 // pred_check_branch
        %180 = sbr.rel (%p178) target = $region36
      $region35: #{cnn_block_forward.3} parent=31 // pred_region
        %s181 = smul.u32 32, %s11
        %p182 = scmp.lt.s32.totalorder %s181, 63
        %s183 = scalar_select %p182, %s181, 63
        %s184 = smul.addr %s183, 8
        %s185 = scalar_lea.vmem %s0, %s184
        %s186 = smul.u32 32, %s11
      $region36: #{cnn_block_forward.3} parent=31 // pred_fallthru
        _
    $region32: #{cnn_block_forward.3} parent=5 // pred_fallthru
      _
    %p187 = scmp.le.s32.totalorder 1, %s11
    %p188 = scmp.lt.s32.totalorder %s11, 3
    %p189 = pnand %p187, %p188
    %p190 = pneg %p189
    // Predicated region
    $region37: #{cnn_block_forward.3} parent=5 // pred_check
      _
    $region38: #{cnn_block_forward.3} parent=5 // pred_check_branch
      %192 = sbr.rel (%p189) target = $region40
    $region39: #{cnn_block_forward.3} parent=5 // pred_region
      %s193 = ssub.s32 %s11, 1
      %s194 = smul.u32 32, %s16
      %p195 = scmp.lt.s32.totalorder %s194, 63
      %s196 = scalar_select %p195, %s194, 63
      %s197 = smul.addr %s196, 8
      %s198 = scalar_lea.vmem %s0, %s197
      %p199 = pneg %p37
      %p200 = pneg %p34
      %p201 = pneg %p58
      %p202 = pneg %p55
      %p203 = pneg %p79
      %p204 = pneg %p76
      %p205 = pneg %p100
      %p206 = pneg %p97
      %p207 = pneg %p121
      %p208 = pneg %p118
      %p209 = pneg %p147
      %p210 = pneg %p144
      %s211 = smul.u32 32, %s16
      %p212 = scmp.lt.s32.totalorder %s211, 63
      %s213 = scalar_select %p212, %s211, 63
      %s214 = smul.addr %s213, 8
      %s215 = scalar_lea.vmem %s5, %s214
      %s216 = smul.u32 32, %s16
      %p217 = scmp.lt.s32.totalorder %s216, 63
      %s218 = scalar_select %p217, %s216, 63
      %s219 = smul.addr %s218, 8
      %s220 = scalar_lea.vmem %s0, %s219
      %s221 = smul.u32 32, %s16
      %s222 = smul.u32 32, %s16
      %p223 = scmp.lt.s32.totalorder %s222, 63
      %s224 = scalar_select %p223, %s222, 63
      %s225 = smul.addr %s224, 8
      %s226 = scalar_lea.vmem %s5, %s225
      %s227 = smul.u32 32, %s16
      %v228 = vld [vmem:[%s1] sm:$0x1]
      %v229 = vmul.f32 %v228, 0.0025510204
      %v230 = vld [vmem:[%s2] sm:$0x1]
      %v231 = vmul.f32 %v230, 0.0025510204
      %v232 = vmul.f32 %v229, %v229
      %v233 = vsub.f32 %v231, %v232
      %v234 = vadd.f32 %v233, 1e-05
      %v235 = vrsqrt.pop %v234
      %v236 = vld [vmem:[%s3] sm:$0x1]
      %v237 = vmul.f32 %v236, %v235
      %v238 = vld [vmem:[%s4] sm:$0x1]
      %v239 = vmul.f32 %v229, %v237
      %v240 = vsub.f32 %v238, %v239
      %v241 = vld [vmem:[%s220] sm:$0xff]
      %v242 = vld [vmem:[%s220 + $0x8] sm:$0xff]
      %v243 = vld [vmem:[%s220 + $0x10] sm:$0xff]
      %v244 = vld [vmem:[%s220 + $0x18] sm:$0xff]
      %v245 = vld [vmem:[%s220 + $0x20] sm:$0xff]
      %v246 = vld [vmem:[%s220 + $0x28] sm:$0xff]
      %v247 = vld [vmem:[%s220 + $0x30] sm:$0xff]
      %v248 = vld [vmem:[%s220 + $0x38] sm:$0xff]
      %v249 = vld [vmem:[%s220 + $0x40] sm:$0xff]
      %v250 = vld [vmem:[%s220 + $0x48] sm:$0xff]
      %v251 = vld [vmem:[%s220 + $0x50] sm:$0xff]
      %v252 = vld [vmem:[%s220 + $0x58] sm:$0xff]
      %v253 = vld [vmem:[%s220 + $0x60] sm:$0xff]
      %v254 = vld [vmem:[%s220 + $0x68] sm:$0xff]
      %v255 = vld [vmem:[%s220 + $0x70] sm:$0xff]
      %v256 = vld [vmem:[%s220 + $0x78] sm:$0xff]
      %v257 = vld [vmem:[%s220 + $0x80] sm:$0xff]
      %v258 = vld [vmem:[%s220 + $0x88] sm:$0xff]
      %v259 = vld [vmem:[%s220 + $0x90] sm:$0xff]
      %v260 = vld [vmem:[%s220 + $0x98] sm:$0xff]
      %v261 = vld [vmem:[%s220 + $0xa0] sm:$0xff]
      %v262 = vld [vmem:[%s220 + $0xa8] sm:$0xff]
      %v263 = vld [vmem:[%s220 + $0xb0] sm:$0xff]
      %v264 = vld [vmem:[%s220 + $0xb8] sm:$0xff]
      %v265 = vld [vmem:[%s220 + $0xc0] sm:$0xff]
      %v266 = vld [vmem:[%s220 + $0xc8] sm:$0xff]
      %v267 = vld [vmem:[%s220 + $0xd0] sm:$0xff]
      %v268 = vld [vmem:[%s220 + $0xd8] sm:$0xff]
      %v269 = vld [vmem:[%s220 + $0xe0] sm:$0xff]
      %v270 = vld [vmem:[%s220 + $0xe8] sm:$0xff]
      %v271 = vld [vmem:[%s220 + $0xf0] sm:$0xff]
      %v272 = vld [vmem:[%s220 + $0xf8] sm:$0xff]
      %v274 = vlaneseq
      %v275 = vshrl.u32 %v274, 7
      %v276 = vsub.s32 0, %v275
      %v277 = vrot.slane %v237, %v276
      %v279 = vmul.f32 %v241, %v277
      %v280 = vmul.f32 %v242, %v277
      %v281 = vmul.f32 %v243, %v277
      %v282 = vmul.f32 %v244, %v277
      %v283 = vmul.f32 %v245, %v277
      %v284 = vmul.f32 %v246, %v277
      %v285 = vmul.f32 %v247, %v277
      %v286 = vmul.f32 %v248, %v277
      %v287 = vmul.f32 %v249, %v277
      %v288 = vmul.f32 %v250, %v277
      %v289 = vmul.f32 %v251, %v277
      %v290 = vmul.f32 %v252, %v277
      %v291 = vmul.f32 %v253, %v277
      %v292 = vmul.f32 %v254, %v277
      %v293 = vmul.f32 %v255, %v277
      %v294 = vmul.f32 %v256, %v277
      %v295 = vmul.f32 %v257, %v277
      %v296 = vmul.f32 %v258, %v277
      %v297 = vmul.f32 %v259, %v277
      %v298 = vmul.f32 %v260, %v277
      %v299 = vmul.f32 %v261, %v277
      %v300 = vmul.f32 %v262, %v277
      %v301 = vmul.f32 %v263, %v277
      %v302 = vmul.f32 %v264, %v277
      %v303 = vmul.f32 %v265, %v277
      %v304 = vmul.f32 %v266, %v277
      %v305 = vmul.f32 %v267, %v277
      %v306 = vmul.f32 %v268, %v277
      %v307 = vmul.f32 %v269, %v277
      %v308 = vmul.f32 %v270, %v277
      %v309 = vmul.f32 %v271, %v277
      %v310 = vmul.f32 %v272, %v277
      %v312 = vlaneseq
      %v313 = vshrl.u32 %v312, 7
      %v314 = vsub.s32 0, %v313
      %v315 = vrot.slane %v240, %v314
      %v317 = vadd.f32 %v279, %v315
      %v318 = vadd.f32 %v280, %v315
      %v319 = vadd.f32 %v281, %v315
      %v320 = vadd.f32 %v282, %v315
      %v321 = vadd.f32 %v283, %v315
      %v322 = vadd.f32 %v284, %v315
      %v323 = vadd.f32 %v285, %v315
      %v324 = vadd.f32 %v286, %v315
      %v325 = vadd.f32 %v287, %v315
      %v326 = vadd.f32 %v288, %v315
      %v327 = vadd.f32 %v289, %v315
      %v328 = vadd.f32 %v290, %v315
      %v329 = vadd.f32 %v291, %v315
      %v330 = vadd.f32 %v292, %v315
      %v331 = vadd.f32 %v293, %v315
      %v332 = vadd.f32 %v294, %v315
      %v333 = vadd.f32 %v295, %v315
      %v334 = vadd.f32 %v296, %v315
      %v335 = vadd.f32 %v297, %v315
      %v336 = vadd.f32 %v298, %v315
      %v337 = vadd.f32 %v299, %v315
      %v338 = vadd.f32 %v300, %v315
      %v339 = vadd.f32 %v301, %v315
      %v340 = vadd.f32 %v302, %v315
      %v341 = vadd.f32 %v303, %v315
      %v342 = vadd.f32 %v304, %v315
      %v343 = vadd.f32 %v305, %v315
      %v344 = vadd.f32 %v306, %v315
      %v345 = vadd.f32 %v307, %v315
      %v346 = vadd.f32 %v308, %v315
      %v347 = vadd.f32 %v309, %v315
      %v348 = vadd.f32 %v310, %v315
      %v349 = vmax.f32 %v317, 0.0
      %v350 = vmax.f32 %v318, 0.0
      %v351 = vmax.f32 %v319, 0.0
      %v352 = vmax.f32 %v320, 0.0
      %v353 = vmax.f32 %v321, 0.0
      %v354 = vmax.f32 %v322, 0.0
      %v355 = vmax.f32 %v323, 0.0
      %v356 = vmax.f32 %v324, 0.0
      %v357 = vmax.f32 %v325, 0.0
      %v358 = vmax.f32 %v326, 0.0
      %v359 = vmax.f32 %v327, 0.0
      %v360 = vmax.f32 %v328, 0.0
      %v361 = vmax.f32 %v329, 0.0
      %v362 = vmax.f32 %v330, 0.0
      %v363 = vmax.f32 %v331, 0.0
      %v364 = vmax.f32 %v332, 0.0
      %v365 = vmax.f32 %v333, 0.0
      %v366 = vmax.f32 %v334, 0.0
      %v367 = vmax.f32 %v335, 0.0
      %v368 = vmax.f32 %v336, 0.0
      %v369 = vmax.f32 %v337, 0.0
      %v370 = vmax.f32 %v338, 0.0
      %v371 = vmax.f32 %v339, 0.0
      %v372 = vmax.f32 %v340, 0.0
      %v373 = vmax.f32 %v341, 0.0
      %v374 = vmax.f32 %v342, 0.0
      %v375 = vmax.f32 %v343, 0.0
      %v376 = vmax.f32 %v344, 0.0
      %v377 = vmax.f32 %v345, 0.0
      %v378 = vmax.f32 %v346, 0.0
      %v379 = vmax.f32 %v347, 0.0
      %v380 = vmax.f32 %v348, 0.0
      %381 = vst [vmem:[%s226] sm:$0xff] %v349
      %382 = vst [vmem:[%s226 + $0x8] sm:$0xff] %v350
      %383 = vst [vmem:[%s226 + $0x10] sm:$0xff] %v351
      %384 = vst [vmem:[%s226 + $0x18] sm:$0xff] %v352
      %385 = vst [vmem:[%s226 + $0x20] sm:$0xff] %v353
      %386 = vst [vmem:[%s226 + $0x28] sm:$0xff] %v354
      %387 = vst [vmem:[%s226 + $0x30] sm:$0xff] %v355
      %388 = vst [vmem:[%s226 + $0x38] sm:$0xff] %v356
      %389 = vst [vmem:[%s226 + $0x40] sm:$0xff] %v357
      %390 = vst [vmem:[%s226 + $0x48] sm:$0xff] %v358
      %391 = vst [vmem:[%s226 + $0x50] sm:$0xff] %v359
      %392 = vst [vmem:[%s226 + $0x58] sm:$0xff] %v360
      %393 = vst [vmem:[%s226 + $0x60] sm:$0xff] %v361
      %394 = vst [vmem:[%s226 + $0x68] sm:$0xff] %v362
      %395 = vst [vmem:[%s226 + $0x70] sm:$0xff] %v363
      %396 = vst [vmem:[%s226 + $0x78] sm:$0xff] %v364
      %397 = vst [vmem:[%s226 + $0x80] sm:$0xff] %v365
      %398 = vst [vmem:[%s226 + $0x88] sm:$0xff] %v366
      %399 = vst [vmem:[%s226 + $0x90] sm:$0xff] %v367
      %400 = vst [vmem:[%s226 + $0x98] sm:$0xff] %v368
      %401 = vst [vmem:[%s226 + $0xa0] sm:$0xff] %v369
      %402 = vst [vmem:[%s226 + $0xa8] sm:$0xff] %v370
      %403 = vst [vmem:[%s226 + $0xb0] sm:$0xff] %v371
      %404 = vst [vmem:[%s226 + $0xb8] sm:$0xff] %v372
      %405 = vst [vmem:[%s226 + $0xc0] sm:$0xff] %v373
      %406 = vst [vmem:[%s226 + $0xc8] sm:$0xff] %v374
      %407 = vst [vmem:[%s226 + $0xd0] sm:$0xff] %v375
      %408 = vst [vmem:[%s226 + $0xd8] sm:$0xff] %v376
      %409 = vst [vmem:[%s226 + $0xe0] sm:$0xff] %v377
      %410 = vst [vmem:[%s226 + $0xe8] sm:$0xff] %v378
      %411 = vst [vmem:[%s226 + $0xf0] sm:$0xff] %v379
      %412 = vst [vmem:[%s226 + $0xf8] sm:$0xff] %v380
      %s413 = smul.u32 32, %s16
      %p414 = scmp.lt.s32.totalorder %s413, 63
      %s415 = scalar_select %p414, %s413, 63
      %s416 = smul.addr %s415, 8
      %s417 = scalar_lea.vmem %s5, %s416
      // Predicated region
      $region41: #{cnn_block_forward.3} parent=39 // pred_check
        %p418 = pneg %p144
      $region42: #{cnn_block_forward.3} parent=39 // pred_check_branch
        %420 = sbr.rel (%p418) target = $region44
      $region43: #{cnn_block_forward.3} parent=39 // pred_region
        %s421 = smul.u32 32, %s16
      $region44: #{cnn_block_forward.3} parent=39 // pred_fallthru
        _
    $region40: #{cnn_block_forward.3} parent=5 // pred_fallthru
      _
    %p422 = scmp.le.s32.totalorder 2, %s11
    // Predicated region
    $region45: #{cnn_block_forward.3} parent=5 // pred_check
      %p423 = pneg %p422
    $region46: #{cnn_block_forward.3} parent=5 // pred_check_branch
      %425 = sbr.rel (%p423) target = $region48
    $region47: #{cnn_block_forward.3} parent=5 // pred_region
      %s426 = ssub.s32 %s11, 2
      // Predicated region
      $region49: #{cnn_block_forward.3} parent=47 // pred_check
        %p427 = pneg %p150
      $region50: #{cnn_block_forward.3} parent=47 // pred_check_branch
        %429 = sbr.rel (%p427) target = $region52
      $region51: #{cnn_block_forward.3} parent=47 // pred_region
        %s430 = smul.u32 32, %s17
        %p431 = scmp.lt.s32.totalorder %s430, 63
        %s432 = scalar_select %p431, %s430, 63
        %s433 = smul.addr %s432, 8
        %s434 = scalar_lea.vmem %s5, %s433
      $region52: #{cnn_block_forward.3} parent=47 // pred_fallthru
        _
    $region48: #{cnn_block_forward.3} parent=5 // pred_fallthru
      _
  $region6: #{cnn_block_forward.3} parent=0 // loop_footer
    %s15 = sadd.s32 1, %s11
  $region7: #{cnn_block_forward.3} parent=0 // loop_footer_branch
    %10 = sbr.rel target = $region3
  $region8: #{cnn_block_forward.3} parent=0 // loop_exit
    _

// kernel: cnn_block_forward.2
$region0: #{cnn_block_forward.2}
  #allocation0 [shape = 'u32[]', space=smem, size = 0x4, offset = 0x4, fixed_abs, tag = 'smem constant byte address 0x4 - core index']
  #allocation1 [shape = 'u32[144,128]{1,0:T(1,128)}', space=vmem, size = 0x12000, scoped, tag = 'internal scratch']
  %s0 = inlined_call_operand.vmem [shape: bf16[512,128], index: 0, kind: input, shape index: {}]
  %s1 = inlined_call_operand.vmem [shape: bf16[128,128], index: 1, kind: input, shape index: {}]
  %s2 = inlined_call_operand.vmem [shape: f32[512,128], index: 2, kind: output, shape index: {0}]
  %s3 = inlined_call_operand.vmem [shape: f32[1,128], index: 3, kind: output, shape index: {1}]
  %s4 = inlined_call_operand.vmem [shape: f32[1,128], index: 4, kind: output, shape index: {2}]
  %5 = xla_tuple %s2, %s3, %s4
  %s6 = sld [smem:[#allocation0]]
  $region61: #{cnn_block_forward.2} parent=0
    _
  %s8 = ssub.s32 1, %s6
  %s9 = scalar_select 0, %s8, %s6
  loop: start=0, step=1, limit=4
  $region2: #{cnn_block_forward.2} parent=0 // loop_pre_header
    _
  $region3: #{cnn_block_forward.2} parent=0 // loop_header
    %s11 = sphi 0, %s15
    %p12 = scmp.ge.s32.totalorder %s11, 4
    %s21 = sphi 0, %s23
    %s24 = sphi 0, %s21
    %s25 = sphi 0, %s24
    %s41 = sphi 0, %s25
    %s45 = sphi 0, %s45
    %s47 = sphi 0, %s45
    %s48 = sphi 0, %s47
    %s62 = sphi 0, %s48
    %s68 = sphi 0, %s70
    %s71 = sphi 0, %s68
    %s72 = sphi 0, %s71
    %s88 = sphi 0, %s72
    %s92 = sphi 0, %s92
    %s94 = sphi 0, %s92
    %s95 = sphi 0, %s94
    %s109 = sphi 0, %s95
    %s113 = sphi 0, %s113
    %s115 = sphi 0, %s113
    %s116 = sphi 0, %s115
    %s130 = sphi 0, %s116
  $region4: #{cnn_block_forward.2} parent=0 // loop_header_branch
    %14 = sbr.rel (%p12) target = $region8
  $region5: #{cnn_block_forward.2} parent=0 // loop_body
    %s16 = ssub.s32 %s11, 1
    %s17 = ssub.s32 %s11, 2
    %s18 = sadd.s32 %s11, 1
    %s19 = ssub.s32 %s11, %s18
    %p20 = scmp.eq.s32.totalorder %s19, 0
    %s22 = sadd.s32 %s21, 1
    %s23 = scalar_select %p20, %s21, %s22
    %p26 = pneg %p20
    %p27 = scmp.eq.s32.totalorder %s11, 1
    %p28 = por %p26, %p27
    %p29 = scmp.ne.s32.totalorder %s21, %s24
    %p30 = scmp.eq.s32.totalorder %s11, 0
    %p31 = por %p29, %p30
    %p32 = scmp.ne.s32.totalorder %s21, %s24
    %p33 = scmp.eq.s32.totalorder %s16, 1
    %p34 = por %p32, %p33
    %p35 = scmp.ne.s32.totalorder %s24, %s25
    %p36 = scmp.eq.s32.totalorder %s16, 0
    %p37 = por %p35, %p36
    %p38 = scmp.ne.s32.totalorder %s24, %s25
    %p39 = scmp.eq.s32.totalorder %s17, 1
    %p40 = por %p38, %p39
    %p42 = scmp.ne.s32.totalorder %s25, %s41
    %p43 = scmp.eq.s32.totalorder %s17, 0
    %p44 = por %p42, %p43
    %s46 = sadd.s32 %s45, 1
    %p49 = scmp.eq.s32.totalorder %s11, 1
    %p50 = scmp.ne.s32.totalorder %s45, %s47
    %p51 = scmp.eq.s32.totalorder %s11, 0
    %p52 = por %p50, %p51
    %p53 = scmp.ne.s32.totalorder %s45, %s47
    %p54 = scmp.eq.s32.totalorder %s16, 1
    %p55 = por %p53, %p54
    %p56 = scmp.ne.s32.totalorder %s47, %s48
    %p57 = scmp.eq.s32.totalorder %s16, 0
    %p58 = por %p56, %p57
    %p59 = scmp.ne.s32.totalorder %s47, %s48
    %p60 = scmp.eq.s32.totalorder %s17, 1
    %p61 = por %p59, %p60
    %p63 = scmp.ne.s32.totalorder %s48, %s62
    %p64 = scmp.eq.s32.totalorder %s17, 0
    %p65 = por %p63, %p64
    %s66 = ssub.s32 %s11, %s18
    %p67 = scmp.eq.s32.totalorder %s66, 0
    %s69 = sadd.s32 %s68, 1
    %s70 = scalar_select %p67, %s68, %s69
    %p73 = pneg %p67
    %p74 = scmp.eq.s32.totalorder %s11, 1
    %p75 = por %p73, %p74
    %p76 = scmp.ne.s32.totalorder %s68, %s71
    %p77 = scmp.eq.s32.totalorder %s11, 0
    %p78 = por %p76, %p77
    %p79 = scmp.ne.s32.totalorder %s68, %s71
    %p80 = scmp.eq.s32.totalorder %s16, 1
    %p81 = por %p79, %p80
    %p82 = scmp.ne.s32.totalorder %s71, %s72
    %p83 = scmp.eq.s32.totalorder %s16, 0
    %p84 = por %p82, %p83
    %p85 = scmp.ne.s32.totalorder %s71, %s72
    %p86 = scmp.eq.s32.totalorder %s17, 1
    %p87 = por %p85, %p86
    %p89 = scmp.ne.s32.totalorder %s72, %s88
    %p90 = scmp.eq.s32.totalorder %s17, 0
    %p91 = por %p89, %p90
    %s93 = sadd.s32 %s92, 1
    %p96 = scmp.eq.s32.totalorder %s11, 1
    %p97 = scmp.ne.s32.totalorder %s92, %s94
    %p98 = scmp.eq.s32.totalorder %s11, 0
    %p99 = por %p97, %p98
    %p100 = scmp.ne.s32.totalorder %s92, %s94
    %p101 = scmp.eq.s32.totalorder %s16, 1
    %p102 = por %p100, %p101
    %p103 = scmp.ne.s32.totalorder %s94, %s95
    %p104 = scmp.eq.s32.totalorder %s16, 0
    %p105 = por %p103, %p104
    %p106 = scmp.ne.s32.totalorder %s94, %s95
    %p107 = scmp.eq.s32.totalorder %s17, 1
    %p108 = por %p106, %p107
    %p110 = scmp.ne.s32.totalorder %s95, %s109
    %p111 = scmp.eq.s32.totalorder %s17, 0
    %p112 = por %p110, %p111
    %s114 = sadd.s32 %s113, 1
    %p117 = scmp.eq.s32.totalorder %s11, 1
    %p118 = scmp.ne.s32.totalorder %s113, %s115
    %p119 = scmp.eq.s32.totalorder %s11, 0
    %p120 = por %p118, %p119
    %p121 = scmp.ne.s32.totalorder %s113, %s115
    %p122 = scmp.eq.s32.totalorder %s16, 1
    %p123 = por %p121, %p122
    %p124 = scmp.ne.s32.totalorder %s115, %s116
    %p125 = scmp.eq.s32.totalorder %s16, 0
    %p126 = por %p124, %p125
    %p127 = scmp.ne.s32.totalorder %s115, %s116
    %p128 = scmp.eq.s32.totalorder %s17, 1
    %p129 = por %p127, %p128
    %p131 = scmp.ne.s32.totalorder %s116, %s130
    %p132 = scmp.eq.s32.totalorder %s17, 0
    %p133 = por %p131, %p132
    %p134 = scmp.le.s32.totalorder 1, %s11
    %p135 = scmp.lt.s32.totalorder %s11, 3
    %p136 = pnand %p134, %p135
    %p137 = pneg %p136
    // Predicated region
    $region9: #{cnn_block_forward.2} parent=5 // pred_check
      _
    $region10: #{cnn_block_forward.2} parent=5 // pred_check_branch
      %139 = sbr.rel (%p136) target = $region12
    $region11: #{cnn_block_forward.2} parent=5 // pred_region
      %s140 = ssub.s32 %s11, 1
      // Predicated region
      $region13: #{cnn_block_forward.2} parent=11 // pred_check
        %p141 = pneg %p58
      $region14: #{cnn_block_forward.2} parent=11 // pred_check_branch
        %143 = sbr.rel (%p141) target = $region16
      $region15: #{cnn_block_forward.2} parent=11 // pred_region
        _
      $region16: #{cnn_block_forward.2} parent=11 // pred_fallthru
        _
    $region12: #{cnn_block_forward.2} parent=5 // pred_fallthru
      _
    %p144 = scmp.lt.s32.totalorder %s11, 2
    // Predicated region
    $region17: #{cnn_block_forward.2} parent=5 // pred_check
      %p145 = pneg %p144
    $region18: #{cnn_block_forward.2} parent=5 // pred_check_branch
      %147 = sbr.rel (%p145) target = $region20
    $region19: #{cnn_block_forward.2} parent=5 // pred_region
      // Predicated region
      $region21: #{cnn_block_forward.2} parent=19 // pred_check
        %p148 = pneg %p31
      $region22: #{cnn_block_forward.2} parent=19 // pred_check_branch
        %150 = sbr.rel (%p148) target = $region24
      $region23: #{cnn_block_forward.2} parent=19 // pred_region
        %s151 = smul.u32 32, %s11
        %p152 = scmp.lt.s32.totalorder %s151, 63
        %s153 = scalar_select %p152, %s151, 63
        %s154 = smul.addr %s153, 4
        %s155 = scalar_lea.vmem %s0, %s154
        %s156 = smul.u32 32, %s11
      $region24: #{cnn_block_forward.2} parent=19 // pred_fallthru
        _
    $region20: #{cnn_block_forward.2} parent=5 // pred_fallthru
      _
    %p157 = scmp.le.s32.totalorder 1, %s11
    %p158 = scmp.lt.s32.totalorder %s11, 3
    %p159 = pnand %p157, %p158
    %p160 = pneg %p159
    // Predicated region
    $region25: #{cnn_block_forward.2} parent=5 // pred_check
      _
    $region26: #{cnn_block_forward.2} parent=5 // pred_check_branch
      %162 = sbr.rel (%p159) target = $region28
    $region27: #{cnn_block_forward.2} parent=5 // pred_region
      %s163 = ssub.s32 %s11, 1
      %s164 = smul.u32 32, %s16
      %p165 = scmp.lt.s32.totalorder %s164, 63
      %s166 = scalar_select %p165, %s164, 63
      %s167 = smul.addr %s166, 4
      %s168 = scalar_lea.vmem %s0, %s167
      %p169 = pneg %p37
      %p170 = pneg %p34
      %p171 = pneg %p58
      %p172 = pneg %p55
      %p173 = pneg %p84
      %p174 = pneg %p81
      %s175 = smul.u32 32, %s16
      %p176 = scmp.lt.s32.totalorder %s175, 63
      %s177 = scalar_select %p176, %s175, 63
      %s178 = smul.addr %s177, 8
      %s179 = scalar_lea.vmem %s2, %s178
      %p180 = pneg %p105
      %p181 = pneg %p102
      %p182 = pneg %p126
      %p183 = pneg %p123
      %s184 = smul.u32 32, %s16
      %p185 = scmp.lt.s32.totalorder %s184, 63
      %s186 = scalar_select %p185, %s184, 63
      %s187 = smul.addr %s186, 4
      %s188 = scalar_lea.vmem %s0, %s187
      %s189 = smul.u32 32, %s16
      %s190 = smul.u32 32, %s16
      %p191 = scmp.lt.s32.totalorder %s190, 63
      %s192 = scalar_select %p191, %s190, 63
      %s193 = smul.addr %s192, 8
      %s194 = scalar_lea.vmem %s2, %s193
      %s195 = smul.u32 32, %s16
      %p197 = scmp.eq.s32.totalorder %s16, 0
      // Predicated region
      $region29: #{cnn_block_forward.2} parent=27 // pred_check
        %p198 = pneg %p197
      $region30: #{cnn_block_forward.2} parent=27 // pred_check_branch
        %200 = sbr.rel (%p198) target = $region32
      $region31: #{cnn_block_forward.2} parent=27 // pred_region
        %201 = vst [vmem:[%s3] sm:$0x1] 0.0
        %202 = vst [vmem:[%s4] sm:$0x1] 0.0
      $region32: #{cnn_block_forward.2} parent=27 // pred_fallthru
        _
      %v203 = vld [vmem:[%s188] sm:$0xf]
      %v204 = vld [vmem:[%s188 + $0x4] sm:$0xf]
      %v205 = vld [vmem:[%s188 + $0x8] sm:$0xf]
      %v206 = vld [vmem:[%s188 + $0xc] sm:$0xf]
      %v207 = vld [vmem:[%s188 + $0x10] sm:$0xf]
      %v208 = vld [vmem:[%s188 + $0x14] sm:$0xf]
      %v209 = vld [vmem:[%s188 + $0x18] sm:$0xf]
      %v210 = vld [vmem:[%s188 + $0x1c] sm:$0xf]
      %v211 = vld [vmem:[%s188 + $0x20] sm:$0xf]
      %v212 = vld [vmem:[%s188 + $0x24] sm:$0xf]
      %v213 = vld [vmem:[%s188 + $0x28] sm:$0xf]
      %v214 = vld [vmem:[%s188 + $0x2c] sm:$0xf]
      %v215 = vld [vmem:[%s188 + $0x30] sm:$0xf]
      %v216 = vld [vmem:[%s188 + $0x34] sm:$0xf]
      %v217 = vld [vmem:[%s188 + $0x38] sm:$0xf]
      %v218 = vld [vmem:[%s188 + $0x3c] sm:$0xf]
      %v219 = vld [vmem:[%s188 + $0x40] sm:$0xf]
      %v220 = vld [vmem:[%s188 + $0x44] sm:$0xf]
      %v221 = vld [vmem:[%s188 + $0x48] sm:$0xf]
      %v222 = vld [vmem:[%s188 + $0x4c] sm:$0xf]
      %v223 = vld [vmem:[%s188 + $0x50] sm:$0xf]
      %v224 = vld [vmem:[%s188 + $0x54] sm:$0xf]
      %v225 = vld [vmem:[%s188 + $0x58] sm:$0xf]
      %v226 = vld [vmem:[%s188 + $0x5c] sm:$0xf]
      %v227 = vld [vmem:[%s188 + $0x60] sm:$0xf]
      %v228 = vld [vmem:[%s188 + $0x64] sm:$0xf]
      %v229 = vld [vmem:[%s188 + $0x68] sm:$0xf]
      %v230 = vld [vmem:[%s188 + $0x6c] sm:$0xf]
      %v231 = vld [vmem:[%s188 + $0x70] sm:$0xf]
      %v232 = vld [vmem:[%s188 + $0x74] sm:$0xf]
      %v233 = vld [vmem:[%s188 + $0x78] sm:$0xf]
      %v234 = vld [vmem:[%s188 + $0x7c] sm:$0xf]
      %v235 = vld [vmem:[%s1] sm:$0xf]
      %v236 = vld [vmem:[%s1 + $0x4] sm:$0xf]
      %v237 = vld [vmem:[%s1 + $0x8] sm:$0xf]
      %v238 = vld [vmem:[%s1 + $0xc] sm:$0xf]
      %v239 = vld [vmem:[%s1 + $0x10] sm:$0xf]
      %v240 = vld [vmem:[%s1 + $0x14] sm:$0xf]
      %v241 = vld [vmem:[%s1 + $0x18] sm:$0xf]
      %v242 = vld [vmem:[%s1 + $0x1c] sm:$0xf]
      %v243 = vld [vmem:[%s1 + $0x20] sm:$0xf]
      %v244 = vld [vmem:[%s1 + $0x24] sm:$0xf]
      %v245 = vld [vmem:[%s1 + $0x28] sm:$0xf]
      %v246 = vld [vmem:[%s1 + $0x2c] sm:$0xf]
      %v247 = vld [vmem:[%s1 + $0x30] sm:$0xf]
      %v248 = vld [vmem:[%s1 + $0x34] sm:$0xf]
      %v249 = vld [vmem:[%s1 + $0x38] sm:$0xf]
      %v250 = vld [vmem:[%s1 + $0x3c] sm:$0xf]
      %v283 = vunpack.c.l.b16 %v203
      %v284 = vunpack.c.l.b16 %v204
      %v285 = vunpack.c.l.b16 %v205
      %v286 = vunpack.c.l.b16 %v206
      %v287 = vunpack.c.l.b16 %v207
      %v288 = vunpack.c.l.b16 %v208
      %v289 = vunpack.c.l.b16 %v209
      %v290 = vunpack.c.l.b16 %v210
      %v291 = vunpack.c.l.b16 %v211
      %v292 = vunpack.c.l.b16 %v212
      %v293 = vunpack.c.l.b16 %v213
      %v294 = vunpack.c.l.b16 %v214
      %v295 = vunpack.c.l.b16 %v215
      %v296 = vunpack.c.l.b16 %v216
      %v297 = vunpack.c.l.b16 %v217
      %v298 = vunpack.c.l.b16 %v218
      %v299 = vunpack.c.l.b16 %v219
      %v300 = vunpack.c.l.b16 %v220
      %v301 = vunpack.c.l.b16 %v221
      %v302 = vunpack.c.l.b16 %v222
      %v303 = vunpack.c.l.b16 %v223
      %v304 = vunpack.c.l.b16 %v224
      %v305 = vunpack.c.l.b16 %v225
      %v306 = vunpack.c.l.b16 %v226
      %v307 = vunpack.c.l.b16 %v227
      %v308 = vunpack.c.l.b16 %v228
      %v309 = vunpack.c.l.b16 %v229
      %v310 = vunpack.c.l.b16 %v230
      %v311 = vunpack.c.l.b16 %v231
      %v312 = vunpack.c.l.b16 %v232
      %v313 = vunpack.c.l.b16 %v233
      %v314 = vunpack.c.l.b16 %v234
      %v315 = vpack.c.b16 %v284, %v283
      %v316 = vpack.c.b16 %v286, %v285
      %v317 = vpack.c.b16 %v288, %v287
      %v318 = vpack.c.b16 %v290, %v289
      %v319 = vpack.c.b16 %v292, %v291
      %v320 = vpack.c.b16 %v294, %v293
      %v321 = vpack.c.b16 %v296, %v295
      %v322 = vpack.c.b16 %v298, %v297
      %v323 = vpack.c.b16 %v300, %v299
      %v324 = vpack.c.b16 %v302, %v301
      %v325 = vpack.c.b16 %v304, %v303
      %v326 = vpack.c.b16 %v306, %v305
      %v327 = vpack.c.b16 %v308, %v307
      %v328 = vpack.c.b16 %v310, %v309
      %v329 = vpack.c.b16 %v312, %v311
      %v330 = vpack.c.b16 %v314, %v313
      %v363 = vunpack.c.l.b16 %v235
      %v364 = vunpack.c.l.b16 %v236
      %v365 = vunpack.c.l.b16 %v237
      %v366 = vunpack.c.l.b16 %v238
      %v367 = vunpack.c.l.b16 %v239
      %v368 = vunpack.c.l.b16 %v240
      %v369 = vunpack.c.l.b16 %v241
      %v370 = vunpack.c.l.b16 %v242
      %v371 = vunpack.c.l.b16 %v243
      %v372 = vunpack.c.l.b16 %v244
      %v373 = vunpack.c.l.b16 %v245
      %v374 = vunpack.c.l.b16 %v246
      %v375 = vunpack.c.l.b16 %v247
      %v376 = vunpack.c.l.b16 %v248
      %v377 = vunpack.c.l.b16 %v249
      %v378 = vunpack.c.l.b16 %v250
      %v379 = vpack.c.b16 %v364, %v363
      %v380 = vpack.c.b16 %v366, %v365
      %v381 = vpack.c.b16 %v368, %v367
      %v382 = vpack.c.b16 %v370, %v369
      %v383 = vpack.c.b16 %v372, %v371
      %v384 = vpack.c.b16 %v374, %v373
      %v385 = vpack.c.b16 %v376, %v375
      %v386 = vpack.c.b16 %v378, %v377
      %395 = vmatprep.subr.bf16.mxu0 0
      %396 = vmatpush1.bf16.msra.mxu0 %v379
      %397 = vmatprep.subr.bf16.mxu0 0
      %398 = vmatpush1.bf16.msra.mxu0 %v380
      %399 = vmatprep.subr.bf16.mxu0 0
      %400 = vmatpush1.bf16.msra.mxu0 %v381
      %401 = vmatprep.subr.bf16.mxu0 0
      %402 = vmatpush1.bf16.msra.mxu0 %v382
      %403 = vmatprep.subr.bf16.mxu0 0
      %404 = vmatpush1.bf16.msra.mxu0 %v383
      %405 = vmatprep.subr.bf16.mxu0 0
      %406 = vmatpush1.bf16.msra.mxu0 %v384
      %407 = vmatprep.subr.bf16.mxu0 0
      %408 = vmatpush1.bf16.msra.mxu0 %v385
      %409 = vmatprep.subr.bf16.mxu0 0
      %410 = vmatpush1.bf16.msra.mxu0 %v386
      %411 = vmatprep.subr.bf16.mxu0 0
      %412 = vmatpush1.bf16.msra.mxu0 0
      %413 = vmatprep.subr.bf16.mxu0 0
      %414 = vmatpush1.bf16.msra.mxu0 0
      %415 = vmatprep.subr.bf16.mxu0 0
      %416 = vmatpush1.bf16.msra.mxu0 0
      %417 = vmatprep.subr.bf16.mxu0 0
      %418 = vmatpush1.bf16.msra.mxu0 0
      %419 = vmatprep.subr.bf16.mxu0 0
      %420 = vmatpush1.bf16.msra.mxu0 0
      %421 = vmatprep.subr.bf16.mxu0 0
      %422 = vmatpush1.bf16.msra.mxu0 0
      %423 = vmatprep.subr.bf16.mxu0 0
      %424 = vmatpush1.bf16.msra.mxu0 0
      %425 = vmatprep.subr.bf16.mxu0 0
      %426 = vmatpush1.bf16.msra.mxu0 0
      %427 = vmatprep.mubr.bf16.mxu0 0
      %428 = vmatmul.mubr.bf16.gmra.mrb[0].mxu0 %v315
      %v429 = vpop.f32.mrb[0].mxu0
      %v430 = vadd.f32 0.0, %v429
      %v431 = vpop.f32.mrb[0].mxu0
      %v432 = vpop.f32.mrb[0].mxu0
      %v433 = vadd.f32 0.0, %v432
      %v434 = vpop.f32.mrb[0].mxu0
      %435 = vmatprep.mubr.bf16.mxu0 0
      %436 = vmatmul.mubr.bf16.gmra.mrb[0].mxu0 %v316
      %v437 = vpop.f32.mrb[0].mxu0
      %v438 = vadd.f32 0.0, %v437
      %v439 = vpop.f32.mrb[0].mxu0
      %v440 = vpop.f32.mrb[0].mxu0
      %v441 = vadd.f32 0.0, %v440
      %v442 = vpop.f32.mrb[0].mxu0
      %443 = vmatprep.mubr.bf16.mxu0 0
      %444 = vmatmul.mubr.bf16.gmra.mrb[0].mxu0 %v317
      %v445 = vpop.f32.mrb[0].mxu0
      %v446 = vadd.f32 0.0, %v445
      %v447 = vpop.f32.mrb[0].mxu0
      %v448 = vpop.f32.mrb[0].mxu0
      %v449 = vadd.f32 0.0, %v448
      %v450 = vpop.f32.mrb[0].mxu0
      %451 = vmatprep.mubr.bf16.mxu0 0
      %452 = vmatmul.mubr.bf16.gmra.mrb[0].mxu0 %v318
      %v453 = vpop.f32.mrb[0].mxu0
      %v454 = vadd.f32 0.0, %v453
      %v455 = vpop.f32.mrb[0].mxu0
      %v456 = vpop.f32.mrb[0].mxu0
      %v457 = vadd.f32 0.0, %v456
      %v458 = vpop.f32.mrb[0].mxu0
      %459 = vmatprep.mubr.bf16.mxu0 0
      %460 = vmatmul.mubr.bf16.gmra.mrb[0].mxu0 %v319
      %v461 = vpop.f32.mrb[0].mxu0
      %v462 = vadd.f32 0.0, %v461
      %v463 = vpop.f32.mrb[0].mxu0
      %v464 = vpop.f32.mrb[0].mxu0
      %v465 = vadd.f32 0.0, %v464
      %v466 = vpop.f32.mrb[0].mxu0
      %467 = vmatprep.mubr.bf16.mxu0 0
      %468 = vmatmul.mubr.bf16.gmra.mrb[0].mxu0 %v320
      %v469 = vpop.f32.mrb[0].mxu0
      %v470 = vadd.f32 0.0, %v469
      %v471 = vpop.f32.mrb[0].mxu0
      %v472 = vpop.f32.mrb[0].mxu0
      %v473 = vadd.f32 0.0, %v472
      %v474 = vpop.f32.mrb[0].mxu0
      %475 = vmatprep.mubr.bf16.mxu0 0
      %476 = vmatmul.mubr.bf16.gmra.mrb[0].mxu0 %v321
      %v477 = vpop.f32.mrb[0].mxu0
      %v478 = vadd.f32 0.0, %v477
      %v479 = vpop.f32.mrb[0].mxu0
      %v480 = vpop.f32.mrb[0].mxu0
      %v481 = vadd.f32 0.0, %v480
      %v482 = vpop.f32.mrb[0].mxu0
      %483 = vmatprep.mubr.bf16.mxu0 0
      %484 = vmatmul.mubr.bf16.gmra.mrb[0].mxu0 %v322
      %v485 = vpop.f32.mrb[0].mxu0
      %v486 = vadd.f32 0.0, %v485
      %v487 = vpop.f32.mrb[0].mxu0
      %v488 = vpop.f32.mrb[0].mxu0
      %v489 = vadd.f32 0.0, %v488
      %v490 = vpop.f32.mrb[0].mxu0
      %491 = vmatprep.mubr.bf16.mxu0 0
      %492 = vmatmul.mubr.bf16.gmra.mrb[0].mxu0 %v323
      %v493 = vpop.f32.mrb[0].mxu0
      %v494 = vadd.f32 0.0, %v493
      %v495 = vpop.f32.mrb[0].mxu0
      %v496 = vpop.f32.mrb[0].mxu0
      %v497 = vadd.f32 0.0, %v496
      %v498 = vpop.f32.mrb[0].mxu0
      %499 = vmatprep.mubr.bf16.mxu0 0
      %500 = vmatmul.mubr.bf16.gmra.mrb[0].mxu0 %v324
      %v501 = vpop.f32.mrb[0].mxu0
      %v502 = vadd.f32 0.0, %v501
      %v503 = vpop.f32.mrb[0].mxu0
      %v504 = vpop.f32.mrb[0].mxu0
      %v505 = vadd.f32 0.0, %v504
      %v506 = vpop.f32.mrb[0].mxu0
      %507 = vmatprep.mubr.bf16.mxu0 0
      %508 = vmatmul.mubr.bf16.gmra.mrb[0].mxu0 %v325
      %v509 = vpop.f32.mrb[0].mxu0
      %v510 = vadd.f32 0.0, %v509
      %v511 = vpop.f32.mrb[0].mxu0
      %v512 = vpop.f32.mrb[0].mxu0
      %v513 = vadd.f32 0.0, %v512
      %v514 = vpop.f32.mrb[0].mxu0
      %515 = vmatprep.mubr.bf16.mxu0 0
      %516 = vmatmul.mubr.bf16.gmra.mrb[0].mxu0 %v326
      %v517 = vpop.f32.mrb[0].mxu0
      %v518 = vadd.f32 0.0, %v517
      %v519 = vpop.f32.mrb[0].mxu0
      %v520 = vpop.f32.mrb[0].mxu0
      %v521 = vadd.f32 0.0, %v520
      %v522 = vpop.f32.mrb[0].mxu0
      %523 = vmatprep.mubr.bf16.mxu0 0
      %524 = vmatmul.mubr.bf16.gmra.mrb[0].mxu0 %v327
      %v525 = vpop.f32.mrb[0].mxu0
      %v526 = vadd.f32 0.0, %v525
      %v527 = vpop.f32.mrb[0].mxu0
      %v528 = vpop.f32.mrb[0].mxu0
      %v529 = vadd.f32 0.0, %v528
      %v530 = vpop.f32.mrb[0].mxu0
      %531 = vmatprep.mubr.bf16.mxu0 0
      %532 = vmatmul.mubr.bf16.gmra.mrb[0].mxu0 %v328
      %v533 = vpop.f32.mrb[0].mxu0
      %v534 = vadd.f32 0.0, %v533
      %v535 = vpop.f32.mrb[0].mxu0
      %v536 = vpop.f32.mrb[0].mxu0
      %v537 = vadd.f32 0.0, %v536
      %v538 = vpop.f32.mrb[0].mxu0
      %539 = vmatprep.mubr.bf16.mxu0 0
      %540 = vmatmul.mubr.bf16.gmra.mrb[0].mxu0 %v329
      %v541 = vpop.f32.mrb[0].mxu0
      %v542 = vadd.f32 0.0, %v541
      %v543 = vpop.f32.mrb[0].mxu0
      %v544 = vpop.f32.mrb[0].mxu0
      %v545 = vadd.f32 0.0, %v544
      %v546 = vpop.f32.mrb[0].mxu0
      %547 = vmatprep.mubr.bf16.mxu0 0
      %548 = vmatmul.mubr.bf16.gmra.mrb[0].mxu0 %v330
      %v549 = vpop.f32.mrb[0].mxu0
      %v550 = vadd.f32 0.0, %v549
      %v551 = vpop.f32.mrb[0].mxu0
      %v552 = vpop.f32.mrb[0].mxu0
      %v553 = vadd.f32 0.0, %v552
      %v554 = vpop.f32.mrb[0].mxu0
      %555 = vdwg.mxu0
      %556 = vst [vmem:[%s194] sm:$0xff] %v430
      %557 = vst [vmem:[%s194 + $0x8] sm:$0xff] %v433
      %558 = vst [vmem:[%s194 + $0x10] sm:$0xff] %v438
      %559 = vst [vmem:[%s194 + $0x18] sm:$0xff] %v441
      %560 = vst [vmem:[%s194 + $0x20] sm:$0xff] %v446
      %561 = vst [vmem:[%s194 + $0x28] sm:$0xff] %v449
      %562 = vst [vmem:[%s194 + $0x30] sm:$0xff] %v454
      %563 = vst [vmem:[%s194 + $0x38] sm:$0xff] %v457
      %564 = vst [vmem:[%s194 + $0x40] sm:$0xff] %v462
      %565 = vst [vmem:[%s194 + $0x48] sm:$0xff] %v465
      %566 = vst [vmem:[%s194 + $0x50] sm:$0xff] %v470
      %567 = vst [vmem:[%s194 + $0x58] sm:$0xff] %v473
      %568 = vst [vmem:[%s194 + $0x60] sm:$0xff] %v478
      %569 = vst [vmem:[%s194 + $0x68] sm:$0xff] %v481
      %570 = vst [vmem:[%s194 + $0x70] sm:$0xff] %v486
      %571 = vst [vmem:[%s194 + $0x78] sm:$0xff] %v489
      %572 = vst [vmem:[%s194 + $0x80] sm:$0xff] %v494
      %573 = vst [vmem:[%s194 + $0x88] sm:$0xff] %v497
      %574 = vst [vmem:[%s194 + $0x90] sm:$0xff] %v502
      %575 = vst [vmem:[%s194 + $0x98] sm:$0xff] %v505
      %576 = vst [vmem:[%s194 + $0xa0] sm:$0xff] %v510
      %577 = vst [vmem:[%s194 + $0xa8] sm:$0xff] %v513
      %578 = vst [vmem:[%s194 + $0xb0] sm:$0xff] %v518
      %579 = vst [vmem:[%s194 + $0xb8] sm:$0xff] %v521
      %580 = vst [vmem:[%s194 + $0xc0] sm:$0xff] %v526
      %581 = vst [vmem:[%s194 + $0xc8] sm:$0xff] %v529
      %582 = vst [vmem:[%s194 + $0xd0] sm:$0xff] %v534
      %583 = vst [vmem:[%s194 + $0xd8] sm:$0xff] %v537
      %584 = vst [vmem:[%s194 + $0xe0] sm:$0xff] %v542
      %585 = vst [vmem:[%s194 + $0xe8] sm:$0xff] %v545
      %586 = vst [vmem:[%s194 + $0xf0] sm:$0xff] %v550
      %587 = vst [vmem:[%s194 + $0xf8] sm:$0xff] %v553
      %v588 = vld [vmem:[%s3] sm:$0x1]
      %v589 = vadd.f32 %v430, %v433
      %v590 = vadd.f32 %v589, %v438
      %v591 = vadd.f32 %v590, %v441
      %v592 = vadd.f32 %v591, %v446
      %v593 = vadd.f32 %v592, %v449
      %v594 = vadd.f32 %v593, %v454
      %v595 = vadd.f32 %v594, %v457
      %v596 = vadd.f32 %v595, %v462
      %v597 = vadd.f32 %v596, %v465
      %v598 = vadd.f32 %v597, %v470
      %v599 = vadd.f32 %v598, %v473
      %v600 = vadd.f32 %v599, %v478
      %v601 = vadd.f32 %v600, %v481
      %v602 = vadd.f32 %v601, %v486
      %v603 = vadd.f32 %v602, %v489
      %v604 = vadd.f32 %v603, %v494
      %v605 = vadd.f32 %v604, %v497
      %v606 = vadd.f32 %v605, %v502
      %v607 = vadd.f32 %v606, %v505
      %v608 = vadd.f32 %v607, %v510
      %v609 = vadd.f32 %v608, %v513
      %v610 = vadd.f32 %v609, %v518
      %v611 = vadd.f32 %v610, %v521
      %v612 = vadd.f32 %v611, %v526
      %v613 = vadd.f32 %v612, %v529
      %v614 = vadd.f32 %v613, %v534
      %v615 = vadd.f32 %v614, %v537
      %v616 = vadd.f32 %v615, %v542
      %v617 = vadd.f32 %v616, %v545
      %v618 = vadd.f32 %v617, %v550
      %v619 = vadd.f32 %v618, %v553
      %v620 = vrot.slane %v619, 4
      %v621 = vadd.f32 %v619, %v620
      %v622 = vrot.slane %v621, 2
      %v623 = vadd.f32 %v621, %v622
      %v624 = vrot.slane %v623, 1
      %v625 = vadd.f32 %v623, %v624
      %v626 = vadd.f32 %v588, %v625
      %627 = vst [vmem:[%s3] sm:$0x1] %v626
      %v628 = vld [vmem:[%s4] sm:$0x1]
      %v629 = vmul.f32 %v430, %v430
      %v630 = vmul.f32 %v433, %v433
      %v631 = vmul.f32 %v438, %v438
      %v632 = vmul.f32 %v441, %v441
      %v633 = vmul.f32 %v446, %v446
      %v634 = vmul.f32 %v449, %v449
      %v635 = vmul.f32 %v454, %v454
      %v636 = vmul.f32 %v457, %v457
      %v637 = vmul.f32 %v462, %v462
      %v638 = vmul.f32 %v465, %v465
      %v639 = vmul.f32 %v470, %v470
      %v640 = vmul.f32 %v473, %v473
      %v641 = vmul.f32 %v478, %v478
      %v642 = vmul.f32 %v481, %v481
      %v643 = vmul.f32 %v486, %v486
      %v644 = vmul.f32 %v489, %v489
      %v645 = vmul.f32 %v494, %v494
      %v646 = vmul.f32 %v497, %v497
      %v647 = vmul.f32 %v502, %v502
      %v648 = vmul.f32 %v505, %v505
      %v649 = vmul.f32 %v510, %v510
      %v650 = vmul.f32 %v513, %v513
      %v651 = vmul.f32 %v518, %v518
      %v652 = vmul.f32 %v521, %v521
      %v653 = vmul.f32 %v526, %v526
      %v654 = vmul.f32 %v529, %v529
      %v655 = vmul.f32 %v534, %v534
      %v656 = vmul.f32 %v537, %v537
      %v657 = vmul.f32 %v542, %v542
      %v658 = vmul.f32 %v545, %v545
      %v659 = vmul.f32 %v550, %v550
      %v660 = vmul.f32 %v553, %v553
      %v661 = vadd.f32 %v629, %v630
      %v662 = vadd.f32 %v661, %v631
      %v663 = vadd.f32 %v662, %v632
      %v664 = vadd.f32 %v663, %v633
      %v665 = vadd.f32 %v664, %v634
      %v666 = vadd.f32 %v665, %v635
      %v667 = vadd.f32 %v666, %v636
      %v668 = vadd.f32 %v667, %v637
      %v669 = vadd.f32 %v668, %v638
      %v670 = vadd.f32 %v669, %v639
      %v671 = vadd.f32 %v670, %v640
      %v672 = vadd.f32 %v671, %v641
      %v673 = vadd.f32 %v672, %v642
      %v674 = vadd.f32 %v673, %v643
      %v675 = vadd.f32 %v674, %v644
      %v676 = vadd.f32 %v675, %v645
      %v677 = vadd.f32 %v676, %v646
      %v678 = vadd.f32 %v677, %v647
      %v679 = vadd.f32 %v678, %v648
      %v680 = vadd.f32 %v679, %v649
      %v681 = vadd.f32 %v680, %v650
      %v682 = vadd.f32 %v681, %v651
      %v683 = vadd.f32 %v682, %v652
      %v684 = vadd.f32 %v683, %v653
      %v685 = vadd.f32 %v684, %v654
      %v686 = vadd.f32 %v685, %v655
      %v687 = vadd.f32 %v686, %v656
      %v688 = vadd.f32 %v687, %v657
      %v689 = vadd.f32 %v688, %v658
      %v690 = vadd.f32 %v689, %v659
      %v691 = vadd.f32 %v690, %v660
      %v692 = vrot.slane %v691, 4
      %v693 = vadd.f32 %v691, %v692
      %v694 = vrot.slane %v693, 2
      %v695 = vadd.f32 %v693, %v694
      %v696 = vrot.slane %v695, 1
      %v697 = vadd.f32 %v695, %v696
      %v698 = vadd.f32 %v628, %v697
      %699 = vst [vmem:[%s4] sm:$0x1] %v698
      %s700 = smul.u32 32, %s16
      %p701 = scmp.lt.s32.totalorder %s700, 63
      %s702 = scalar_select %p701, %s700, 63
      %s703 = smul.addr %s702, 8
      %s704 = scalar_lea.vmem %s2, %s703
      // Predicated region
      $region33: #{cnn_block_forward.2} parent=27 // pred_check
        %p705 = pneg %p81
      $region34: #{cnn_block_forward.2} parent=27 // pred_check_branch
        %707 = sbr.rel (%p705) target = $region36
      $region35: #{cnn_block_forward.2} parent=27 // pred_region
        %s708 = smul.u32 32, %s16
      $region36: #{cnn_block_forward.2} parent=27 // pred_fallthru
        _
      // Predicated region
      $region37: #{cnn_block_forward.2} parent=27 // pred_check
        %p709 = pneg %p102
      $region38: #{cnn_block_forward.2} parent=27 // pred_check_branch
        %711 = sbr.rel (%p709) target = $region40
      $region39: #{cnn_block_forward.2} parent=27 // pred_region
        _
      $region40: #{cnn_block_forward.2} parent=27 // pred_fallthru
        _
      // Predicated region
      $region41: #{cnn_block_forward.2} parent=27 // pred_check
        %p712 = pneg %p123
      $region42: #{cnn_block_forward.2} parent=27 // pred_check_branch
        %714 = sbr.rel (%p712) target = $region44
      $region43: #{cnn_block_forward.2} parent=27 // pred_region
        _
      $region44: #{cnn_block_forward.2} parent=27 // pred_fallthru
        _
      // Predicated region
      $region45: #{cnn_block_forward.2} parent=27 // pred_check
        %p715 = pneg %p102
      $region46: #{cnn_block_forward.2} parent=27 // pred_check_branch
        %717 = sbr.rel (%p715) target = $region48
      $region47: #{cnn_block_forward.2} parent=27 // pred_region
        _
      $region48: #{cnn_block_forward.2} parent=27 // pred_fallthru
        _
      // Predicated region
      $region49: #{cnn_block_forward.2} parent=27 // pred_check
        %p718 = pneg %p123
      $region50: #{cnn_block_forward.2} parent=27 // pred_check_branch
        %720 = sbr.rel (%p718) target = $region52
      $region51: #{cnn_block_forward.2} parent=27 // pred_region
        _
      $region52: #{cnn_block_forward.2} parent=27 // pred_fallthru
        _
    $region28: #{cnn_block_forward.2} parent=5 // pred_fallthru
      _
    %p721 = scmp.le.s32.totalorder 2, %s11
    // Predicated region
    $region53: #{cnn_block_forward.2} parent=5 // pred_check
      %p722 = pneg %p721
    $region54: #{cnn_block_forward.2} parent=5 // pred_check_branch
      %724 = sbr.rel (%p722) target = $region56
    $region55: #{cnn_block_forward.2} parent=5 // pred_region
      %s725 = ssub.s32 %s11, 2
      // Predicated region
      $region57: #{cnn_block_forward.2} parent=55 // pred_check
        %p726 = pneg %p87
      $region58: #{cnn_block_forward.2} parent=55 // pred_check_branch
        %728 = sbr.rel (%p726) target = $region60
      $region59: #{cnn_block_forward.2} parent=55 // pred_region
        %s729 = smul.u32 32, %s17
        %p730 = scmp.lt.s32.totalorder %s729, 63
        %s731 = scalar_select %p730, %s729, 63
        %s732 = smul.addr %s731, 8
        %s733 = scalar_lea.vmem %s2, %s732
      $region60: #{cnn_block_forward.2} parent=55 // pred_fallthru
        _
    $region56: #{cnn_block_forward.2} parent=5 // pred_fallthru
      _
  $region6: #{cnn_block_forward.2} parent=0 // loop_footer
    %s15 = sadd.s32 1, %s11
  $region7: #{cnn_block_forward.2} parent=0 // loop_footer_branch
    %10 = sbr.rel target = $region3
  $region8: #{cnn_block_forward.2} parent=0 // loop_exit
    _

</llo_original>
